<compile_context>
chip_gen: v6e
topology: v6e:2x2x1
jax: 0.10.0
libtpu: 0.0.40
codegen_flags: <defaults>
</compile_context>

<pallas_src>
import math
import numpy as np
import jax
import jax.numpy as jnp
from jax.experimental import pallas as pl
from jax.experimental.pallas import tpu as pltpu


# ---------------------------------------------------------------------------
# Fused kernel: (gather + folded Linear1) -> SiLU -> Linear2, all lane-dense.
# ---------------------------------------------------------------------------
def _time_embed_kernel(idx_ref, table_ref, w2_ref, b2_ref, o_ref):
    idx = idx_ref[...]                      # (g, pack) int32, pre-shifted by j*T_pad
    g, pack = idx.shape
    kdim = table_ref.shape[0]               # pack * T_pad

    # One-hot gather. Per packed slot j the valid index range [j*T_pad,(j+1)*T_pad)
    # is disjoint, so OR-ing the pack comparisons yields exactly one 1.0 per slot.
    col = jax.lax.broadcasted_iota(jnp.int32, (g, kdim), 1)
    hit = col == idx[:, 0:1]
    for j in range(1, pack):                # static unroll (pack is 4 for D=32)
        hit = hit | (col == idx[:, j:j + 1])
    onehot = hit.astype(jnp.float32)

    # Gather + (pre-folded) Linear1 as a single MXU matmul against the
    # block-diagonal fused table -> (g, pack*D), fully lane-dense.
    x = jnp.dot(onehot, table_ref[...], preferred_element_type=jnp.float32)

    # SiLU (sigmoid goes to the EUP slot).
    h = x * jax.nn.sigmoid(x)

    # Linear2 with block-diagonal W2^T and lane-tiled bias; dense 128-lane store.
    o_ref[...] = jnp.dot(h, w2_ref[...], preferred_element_type=jnp.float32) + b2_ref[...]


def _block_diag(block, copies):
    """Block-diagonal stack of `copies` repeats of `block` (r, c) -> (copies*r, copies*c)."""
    r, c = block.shape
    out = jnp.zeros((copies * r, copies * c), block.dtype)
    for j in range(copies):
        out = out.at[j * r:(j + 1) * r, j * c:(j + 1) * c].set(block)
    return out


def time_embedding_pallas(flat_time, fused_table, w2_t, b2, *, max_tile_n=1024):
    """flat_time: [N] int; fused_table: [T, D] (= time_embs @ W1^T + b1);
    w2_t: [D, D]; b2: [D]  ->  [N, D] f32 = SiLU(fused_table[time]) @ w2_t + b2."""
    n = flat_time.shape[0]
    t, d = fused_table.shape

    # Lane-packing factor: pack `pack` consecutive rows into one 128-lane row.
    pack = 128 // d if (d <= 128 and 128 % d == 0) else 1

    # Pad table rows to a sublane multiple; padded rows are never selected
    # (valid indices are < T).
    t_pad = ((t + 7) // 8) * 8
    if t_pad != t:
        fused_table = jnp.pad(fused_table, ((0, t_pad - t), (0, 0)))

    # Block-diagonal operands so every MXU output / store is 128-lane dense.
    if pack > 1:
        table_blk = _block_diag(fused_table, pack)          # (pack*T_pad, pack*D)
        w2_blk = _block_diag(w2_t, pack)                     # (pack*D, pack*D) = (128,128)
        b2_blk = jnp.tile(b2.reshape(1, d), (1, pack))       # (1, pack*D)
    else:
        table_blk, w2_blk, b2_blk = fused_table, w2_t, b2.reshape(1, d)

    # Row-tile selection: multiples of 8*pack, minimize padded rows, prefer the
    # largest such tile (fewer grid steps; per-step overhead ~0.35us).
    unit = 8 * pack
    cap = max(unit, (max_tile_n // unit) * unit)
    best = None
    for cand in range(unit, cap + 1, unit):
        padded = ((n + cand - 1) // cand) * cand
        if best is None or padded < best[0] or (padded == best[0] and cand > best[1]):
            best = (padded, cand)
    n_pad, tile_n = best

    idx = flat_time.astype(jnp.int32)
    if n_pad != n:
        idx = jnp.pad(idx, (0, n_pad - n))                   # padded rows -> index 0 (valid)
    # Pre-shift indices so packed slot j hits block j of the block-diagonal table.
    idx_blk = (idx.reshape(n_pad // pack, pack)
               + t_pad * jnp.arange(pack, dtype=jnp.int32)[None, :])

    g_tile = tile_n // pack
    kdim = pack * t_pad
    nd = pack * d

    # TODO(synk): for very large T (DDPM T >= ~4k) the O(N*T) one-hot gather should
    # switch to an in-kernel jnp.take on the VMEM-resident table.
    cost = pl.CostEstimate(
        flops=2 * n_pad * d * (t_pad + d),
        transcendentals=n_pad * d,
        bytes_accessed=(n_pad * 4 + n_pad * d * 4 + kdim * nd * 4 + nd * nd * 4 + nd * 4),
    )

    out = pl.pallas_call(
        _time_embed_kernel,
        out_shape=jax.ShapeDtypeStruct((n_pad // pack, nd), jnp.float32),
        grid=(n_pad // tile_n,),
        in_specs=[
            pl.BlockSpec((g_tile, pack), lambda i: (i, 0)),   # shifted indices per tile
            pl.BlockSpec((kdim, nd), lambda i: (0, 0)),       # block-diag fused table, resident
            pl.BlockSpec((nd, nd), lambda i: (0, 0)),         # block-diag W2^T, resident
            pl.BlockSpec((1, nd), lambda i: (0, 0)),          # lane-tiled b2, resident
        ],
        out_specs=pl.BlockSpec((g_tile, nd), lambda i: (i, 0)),   # lane-dense stores
        compiler_params=pltpu.CompilerParams(
            dimension_semantics=("parallel",),                # shard row tiles on v7x megacore
        ),
        cost_estimate=cost,
    )(idx_blk, table_blk, w2_blk, b2_blk)

    # (n_pad//pack, pack*D) row-major is bit-identical to (n_pad, D) row-major.
    return out.reshape(n_pad, d)[:n]


# ---------------------------------------------------------------------------
# Module-equivalent wrapper
# ---------------------------------------------------------------------------
class TimeEmbeddingBlockPallas:
    def __init__(self, total_time: int, time_embedding_dim: int, key):
        assert time_embedding_dim % 2 == 0, "time embedding must be divisible by 2."
        self.T = total_time
        self.D = time_embedding_dim
        d = time_embedding_dim

        # Sinusoidal table [T, D] built from times 1..T, exactly as in the module.
        half = d // 2
        exponent = 2.0 * jnp.arange(half, dtype=jnp.float32) / float(d)
        factor = (10000.0 ** exponent)[None, :]                       # [1, D/2]
        times = jnp.arange(1, total_time + 1, dtype=jnp.float32)[:, None] / factor
        self.time_embs = jnp.concatenate([jnp.sin(times), jnp.cos(times)], axis=1)

        # Deterministic Linear params (PyTorch-style uniform init).
        k1, k2, k3, k4 = jax.random.split(key, 4)
        bound = 1.0 / math.sqrt(d)
        w1 = jax.random.uniform(k1, (d, d), jnp.float32, -bound, bound)
        b1 = jax.random.uniform(k2, (d,), jnp.float32, -bound, bound)
        w2 = jax.random.uniform(k3, (d, d), jnp.float32, -bound, bound)
        b2 = jax.random.uniform(k4, (d,), jnp.float32, -bound, bound)
        self.w1_t = w1.T
        self.b1 = b1.reshape(1, d)
        self.w2_t = w2.T
        self.b2 = b2

        # Fold Linear1 into the table (exact: the row-gather commutes with the matmul).
        self.fused_table = self.time_embs @ self.w1_t + self.b1       # [T, D]

    def __call__(self, time):
        """time: integer array of arbitrary shape [...] -> output [..., D]."""
        # NOTE: torch asserts 0 <= time < T at runtime; out-of-range indices here
        # would select an all-zero one-hot row (output = b2) instead of erroring.
        time = jnp.asarray(time)
        orig_shape = time.shape
        flat_time = time.reshape(-1)
        out = time_embedding_pallas(flat_time, self.fused_table, self.w2_t, self.b2)
        return out.reshape(*orig_shape, self.D)


# ---------------------------------------------------------------------------
# Pure-JAX reference (unfused weights) for correctness check
# ---------------------------------------------------------------------------
def _reference(block: TimeEmbeddingBlockPallas, time):
    time = jnp.asarray(time)
    embs = jnp.take(block.time_embs, time.reshape(-1), axis=0)
    h = embs @ block.w1_t + block.b1
    h = h * jax.nn.sigmoid(h)
    o = h @ block.w2_t + block.b2.reshape(1, -1)
    return o.reshape(*time.shape, block.D)


if __name__ == "__main__":
    key = jax.random.PRNGKey(0)
    k_param, k_time = jax.random.split(key)

    total_time = 100
    time_embedding_dim = 32
    batch = 8

    block = TimeEmbeddingBlockPallas(total_time, time_embedding_dim, k_param)

    time = jax.random.randint(k_time, (batch,), 0, total_time, dtype=jnp.int32)
    # mirror the module's assertion (done host-side on concrete values)
    t_np = np.asarray(time)
    assert (t_np >= 0).all() and (t_np < total_time).all()

    out = jax.block_until_ready(block(time))
    ref = jax.block_until_ready(_reference(block, time))

    assert out.shape == (batch, time_embedding_dim)
    np.testing.assert_allclose(np.asarray(out), np.asarray(ref), rtol=1e-5, atol=1e-5)

    print("KERNEL_OK")
</pallas_src>

<mosaic_0001>
module attributes {stable_mosaic.version = 11 : i64} {
  func.func @_time_embed_kernel(%arg0: i32, %arg1: memref<8x4xi32, #tpu.memory_space<vmem>>, %arg2: memref<416x128xf32, #tpu.memory_space<vmem>>, %arg3: memref<128x128xf32, #tpu.memory_space<vmem>>, %arg4: memref<1x128xf32, #tpu.memory_space<vmem>>, %arg5: memref<8x128xf32, #tpu.memory_space<vmem>>) attributes {dimension_semantics = [#tpu.dimension_semantics<parallel>], iteration_bounds = array<i64: 1>, scalar_prefetch = 0 : i64, scratch_operands = 0 : i64, tpu.core_type = #tpu.core_type<tc>, window_params = [{transform_indices = @transform_0, window_bounds = array<i64: 8, 4>}, {pipeline_mode = #tpu.pipeline_mode<synchronous>, transform_indices = @transform_1, window_bounds = array<i64: 416, 128>}, {pipeline_mode = #tpu.pipeline_mode<synchronous>, transform_indices = @transform_2, window_bounds = array<i64: 128, 128>}, {pipeline_mode = #tpu.pipeline_mode<synchronous>, transform_indices = @transform_3, window_bounds = array<i64: 1, 128>}, {transform_indices = @transform_4, window_bounds = array<i64: 8, 128>}]} {
    %c0 = arith.constant 0 : index
    %c0_0 = arith.constant 0 : index
    %0 = vector.load %arg1[%c0, %c0_0] : memref<8x4xi32, #tpu.memory_space<vmem>>, vector<8x4xi32>
    %1 = tpu.iota {dimensions = array<i32: 1>} : vector<8x416xi32>
    %2 = vector.extract_strided_slice %0 {offsets = [0, 0], sizes = [8, 1], strides = [1, 1]} : vector<8x4xi32> to vector<8x1xi32>
    %3 = vector.broadcast %2 : vector<8x1xi32> to vector<8x416xi32>
    %4 = arith.cmpi eq, %1, %3 : vector<8x416xi32>
    %5 = vector.extract_strided_slice %0 {offsets = [0, 1], sizes = [8, 1], strides = [1, 1]} : vector<8x4xi32> to vector<8x1xi32>
    %6 = vector.broadcast %5 : vector<8x1xi32> to vector<8x416xi32>
    %7 = arith.cmpi eq, %1, %6 : vector<8x416xi32>
    %8 = arith.ori %4, %7 : vector<8x416xi1>
    %9 = vector.extract_strided_slice %0 {offsets = [0, 2], sizes = [8, 1], strides = [1, 1]} : vector<8x4xi32> to vector<8x1xi32>
    %10 = vector.broadcast %9 : vector<8x1xi32> to vector<8x416xi32>
    %11 = arith.cmpi eq, %1, %10 : vector<8x416xi32>
    %12 = arith.ori %8, %11 : vector<8x416xi1>
    %13 = vector.extract_strided_slice %0 {offsets = [0, 3], sizes = [8, 1], strides = [1, 1]} : vector<8x4xi32> to vector<8x1xi32>
    %14 = vector.broadcast %13 : vector<8x1xi32> to vector<8x416xi32>
    %15 = arith.cmpi eq, %1, %14 : vector<8x416xi32>
    %16 = arith.ori %12, %15 : vector<8x416xi1>
    %17 = arith.extui %16 : vector<8x416xi1> to vector<8x416xi32>
    %18 = arith.sitofp %17 : vector<8x416xi32> to vector<8x416xf32>
    %c0_1 = arith.constant 0 : index
    %c0_2 = arith.constant 0 : index
    %19 = vector.load %arg2[%c0_1, %c0_2] : memref<416x128xf32, #tpu.memory_space<vmem>>, vector<416x128xf32>
    %cst = arith.constant dense<0.000000e+00> : vector<8x128xf32>
    %20 = tpu.matmul %18, %19, %cst {dimension_numbers = #tpu.dot_dimension_numbers<[1], [0], [0], [1], [0, 0, 1, 1], [], []>} : vector<8x416xf32>, vector<416x128xf32>, vector<8x128xf32> -> vector<8x128xf32>
    %21 = arith.negf %20 : vector<8x128xf32>
    %22 = math.exp %21 : vector<8x128xf32>
    %cst_3 = arith.constant 1.000000e+00 : f32
    %23 = vector.broadcast %cst_3 : f32 to vector<8x128xf32>
    %24 = arith.addf %23, %22 : vector<8x128xf32>
    %25 = arith.divf %23, %24 : vector<8x128xf32>
    %26 = arith.mulf %20, %25 : vector<8x128xf32>
    %c0_4 = arith.constant 0 : index
    %c0_5 = arith.constant 0 : index
    %27 = vector.load %arg3[%c0_4, %c0_5] : memref<128x128xf32, #tpu.memory_space<vmem>>, vector<128x128xf32>
    %cst_6 = arith.constant dense<0.000000e+00> : vector<8x128xf32>
    %28 = tpu.matmul %26, %27, %cst_6 {dimension_numbers = #tpu.dot_dimension_numbers<[1], [0], [0], [1], [0, 0, 1, 1], [], []>} : vector<8x128xf32>, vector<128x128xf32>, vector<8x128xf32> -> vector<8x128xf32>
    %c0_7 = arith.constant 0 : index
    %c0_8 = arith.constant 0 : index
    %29 = vector.load %arg4[%c0_7, %c0_8] : memref<1x128xf32, #tpu.memory_space<vmem>>, vector<1x128xf32>
    %30 = vector.broadcast %29 : vector<1x128xf32> to vector<8x128xf32>
    %31 = arith.addf %28, %30 : vector<8x128xf32>
    %c0_9 = arith.constant 0 : index
    %c0_10 = arith.constant 0 : index
    %32 = vector.load %arg5[%c0_9, %c0_10] : memref<8x128xf32, #tpu.memory_space<vmem>>, vector<8x128xf32>
    tpu.vector_store %arg5[%c0_9, %c0_10], %31 {strides = array<i32>} : memref<8x128xf32, #tpu.memory_space<vmem>>, vector<8x128xf32>,
    return
  }
  func.func @transform_0(%arg0: i32) -> (i32, i32) {
    %c0_i32 = arith.constant 0 : i32
    %c0_i32_0 = arith.constant 0 : i32
    return %arg0, %c0_i32 : i32, i32
  }
  func.func @transform_1(%arg0: i32) -> (i32, i32) {
    %c0_i32 = arith.constant 0 : i32
    %c0_i32_0 = arith.constant 0 : i32
    %c0_i32_1 = arith.constant 0 : i32
    return %c0_i32, %c0_i32_0 : i32, i32
  }
  func.func @transform_2(%arg0: i32) -> (i32, i32) {
    %c0_i32 = arith.constant 0 : i32
    %c0_i32_0 = arith.constant 0 : i32
    %c0_i32_1 = arith.constant 0 : i32
    return %c0_i32, %c0_i32_0 : i32, i32
  }
  func.func @transform_3(%arg0: i32) -> (i32, i32) {
    %c0_i32 = arith.constant 0 : i32
    %c0_i32_0 = arith.constant 0 : i32
    %c0_i32_1 = arith.constant 0 : i32
    return %c0_i32, %c0_i32_0 : i32, i32
  }
  func.func @transform_4(%arg0: i32) -> (i32, i32) {
    %c0_i32 = arith.constant 0 : i32
    %c0_i32_0 = arith.constant 0 : i32
    return %arg0, %c0_i32 : i32, i32
  }
}

</mosaic_0001>

<llo_original>
// kernel: tpu_custom_call.1
$region0: #{tpu_custom_call.1}
  #allocation0 [shape = 'u32[]', space=smem, size = 0x4, offset = 0x4, fixed_abs, tag = 'smem constant byte address 0x4 - core index']
  #allocation1 [shape = 'u32[144,128]{1,0:T(1,128)}', space=vmem, size = 0x12000, scoped, tag = 'internal scratch']
  %s0 = inlined_call_operand.vmem [shape: s32[8,4], index: 0, kind: input, shape index: {}]
  %s1 = inlined_call_operand.hbm [shape: f32[416,128], index: 1, kind: input, shape index: {}]
  %s2 = inlined_call_operand.hbm [shape: f32[128,128], index: 2, kind: input, shape index: {}]
  %s3 = inlined_call_operand.vmem [shape: f32[1,128], index: 3, kind: input, shape index: {}]
  %s4 = inlined_call_operand.hbm [shape: f32[8,128], index: 4, kind: output, shape index: {}]
  %s5 = sld [smem:[#allocation0]]
  $region34: #{tpu_custom_call.1} parent=0
    _
  %s7 = ssub.s32 1, %s5
  %s8 = scalar_select 0, %s7, %s5
  $region1: #{tpu_custom_call.1} parent=0
    #allocation2 [shape = 'u8[212992]{0}', space=vmem, size = 0x34000, scoped, tag = 'input window, operand 1, single buffered']
    #allocation3 [shape = 's32[1]{0}', space=sflag, size = 0x4, scoped, tag = 'scoped memory for tpu_custom_call.1']
    #allocation4 [shape = 's32[1]{0}', space=sflag, size = 0x4, scoped, tag = 'scoped memory for tpu_custom_call.1']
    #allocation5 [shape = 'u8[65536]{0}', space=vmem, size = 0x10000, scoped, tag = 'input window, operand 2, single buffered']
    #allocation6 [shape = 's32[1]{0}', space=sflag, size = 0x4, scoped, tag = 'scoped memory for tpu_custom_call.1']
    #allocation7 [shape = 'u8[4096]{0}', space=vmem, size = 0x1000, scoped, tag = 'output window, operand 0, single buffered']
    %9 = vsyncpa [#allocation3], 0
    %10 = vsyncpa [#allocation6], 0
    %11 = vsyncpa [#allocation4], 0
    // Predicated region
    $region2: #{tpu_custom_call.1} parent=1 // pred_check
      _
    $region3: #{tpu_custom_call.1} parent=1 // pred_check_branch
      %13 = sbr.rel (0) target = $region5
    $region4: #{tpu_custom_call.1} parent=1 // pred_region
      _
    $region5: #{tpu_custom_call.1} parent=1 // pred_fallthru
      _
    // Predicated region
    $region6: #{tpu_custom_call.1} parent=1 // pred_check
      _
    $region7: #{tpu_custom_call.1} parent=1 // pred_check_branch
      %15 = sbr.rel (0) target = $region9
    $region8: #{tpu_custom_call.1} parent=1 // pred_region
      %s17 = ssub.s32 6656, 6656
      %18 = vsyncadd [#allocation3], %s17
      %s19 = sshll.u32 [#allocation2], 4
      %s20 = int_to_ptr.vmem [resolvable:$true] %s19
      %25 = dma.hbm_to_vmem [thread:$0]  %s1, 6656, %s20, [#allocation3], 128, 128, 8
    $region9: #{tpu_custom_call.1} parent=1 // pred_fallthru
      _
    // Predicated region
    $region10: #{tpu_custom_call.1} parent=1 // pred_check
      _
    $region11: #{tpu_custom_call.1} parent=1 // pred_check_branch
      %27 = sbr.rel (0) target = $region13
    $region12: #{tpu_custom_call.1} parent=1 // pred_region
      %s29 = ssub.s32 2048, 2048
      %30 = vsyncadd [#allocation6], %s29
      %s31 = sshll.u32 [#allocation5], 4
      %s32 = int_to_ptr.vmem [resolvable:$true] %s31
      %37 = dma.hbm_to_vmem [thread:$0]  %s2, 2048, %s32, [#allocation6], 128, 128, 8
    $region13: #{tpu_custom_call.1} parent=1 // pred_fallthru
      _
    // Predicated region
    $region14: #{tpu_custom_call.1} parent=1 // pred_check
      _
    $region15: #{tpu_custom_call.1} parent=1 // pred_check_branch
      %39 = sbr.rel (0) target = $region17
    $region16: #{tpu_custom_call.1} parent=1 // pred_region
      _
    $region17: #{tpu_custom_call.1} parent=1 // pred_fallthru
      _
    // Predicated region
    $region18: #{tpu_custom_call.1} parent=1 // pred_check
      _
    $region19: #{tpu_custom_call.1} parent=1 // pred_check_branch
      %41 = sbr.rel (0) target = $region21
    $region20: #{tpu_custom_call.1} parent=1 // pred_region
      %42 = dma.done [#allocation3], 6656
    $region21: #{tpu_custom_call.1} parent=1 // pred_fallthru
      _
    // Predicated region
    $region22: #{tpu_custom_call.1} parent=1 // pred_check
      _
    $region23: #{tpu_custom_call.1} parent=1 // pred_check_branch
      %44 = sbr.rel (0) target = $region25
    $region24: #{tpu_custom_call.1} parent=1 // pred_region
      %45 = dma.done [#allocation6], 2048
    $region25: #{tpu_custom_call.1} parent=1 // pred_fallthru
      _
    %v46 = vld [vmem:[%s0] sm:$0xff]
    %v47 = vlaneseq
    %v48 = vand.u32 %v47, 127
    %v49 = vadd.s32 %v48, 128
    %v50 = vadd.s32 %v48, 256
    %v51 = vadd.s32 %v48, 384
    %52 = vset.pattern.permute.xlu0 0
    %53 = vperm.xlu0 %52, %v46
    %v54 = vpop.permute.xlu0 %53
    %vm55 = vcmp.eq.s32.totalorder %v48, %v54
    %vm56 = vcmp.eq.s32.totalorder %v49, %v54
    %vm57 = vcmp.eq.s32.totalorder %v50, %v54
    %vm58 = vcmp.eq.s32.totalorder %v51, %v54
    %59 = vset.pattern.permute.xlu0 1
    %60 = vperm.xlu0 %59, %v46
    %v61 = vpop.permute.xlu0 %60
    %vm62 = vcmp.eq.s32.totalorder %v48, %v61
    %vm63 = vcmp.eq.s32.totalorder %v49, %v61
    %vm64 = vcmp.eq.s32.totalorder %v50, %v61
    %vm65 = vcmp.eq.s32.totalorder %v51, %v61
    %vm66 = vmor %vm55, %vm62
    %vm67 = vmor %vm56, %vm63
    %vm68 = vmor %vm57, %vm64
    %vm69 = vmor %vm58, %vm65
    %70 = vset.pattern.permute.xlu0 2
    %71 = vperm.xlu0 %70, %v46
    %v72 = vpop.permute.xlu0 %71
    %vm73 = vcmp.eq.s32.totalorder %v48, %v72
    %vm74 = vcmp.eq.s32.totalorder %v49, %v72
    %vm75 = vcmp.eq.s32.totalorder %v50, %v72
    %vm76 = vcmp.eq.s32.totalorder %v51, %v72
    %vm77 = vmor %vm66, %vm73
    %vm78 = vmor %vm67, %vm74
    %vm79 = vmor %vm68, %vm75
    %vm80 = vmor %vm69, %vm76
    %81 = vset.pattern.permute.xlu0 3
    %82 = vperm.xlu0 %81, %v46
    %v83 = vpop.permute.xlu0 %82
    %vm84 = vcmp.eq.s32.totalorder %v48, %v83
    %vm85 = vcmp.eq.s32.totalorder %v49, %v83
    %vm86 = vcmp.eq.s32.totalorder %v50, %v83
    %vm87 = vcmp.eq.s32.totalorder %v51, %v83
    %vm88 = vmor %vm77, %vm84
    %vm89 = vmor %vm78, %vm85
    %vm90 = vmor %vm79, %vm86
    %vm91 = vmor %vm80, %vm87
    %v92 = vsel %vm88, 1, 0
    %v93 = vsel %vm89, 1, 0
    %v94 = vsel %vm90, 1, 0
    %v95 = vsel %vm91, 1, 0
    %v96 = vcvt.s32.f32 %v92
    %v97 = vcvt.s32.f32 %v93
    %v98 = vcvt.s32.f32 %v94
    %v99 = vcvt.s32.f32 %v95
    %v100 = vld [vmem:[#allocation2] sm:$0xff]
    %v101 = vld [vmem:[#allocation2 + $0x8] sm:$0xff]
    %v102 = vld [vmem:[#allocation2 + $0x10] sm:$0xff]
    %v103 = vld [vmem:[#allocation2 + $0x18] sm:$0xff]
    %v104 = vld [vmem:[#allocation2 + $0x20] sm:$0xff]
    %v105 = vld [vmem:[#allocation2 + $0x28] sm:$0xff]
    %v106 = vld [vmem:[#allocation2 + $0x30] sm:$0xff]
    %v107 = vld [vmem:[#allocation2 + $0x38] sm:$0xff]
    %v108 = vld [vmem:[#allocation2 + $0x40] sm:$0xff]
    %v109 = vld [vmem:[#allocation2 + $0x48] sm:$0xff]
    %v110 = vld [vmem:[#allocation2 + $0x50] sm:$0xff]
    %v111 = vld [vmem:[#allocation2 + $0x58] sm:$0xff]
    %v112 = vld [vmem:[#allocation2 + $0x60] sm:$0xff]
    %v113 = vld [vmem:[#allocation2 + $0x68] sm:$0xff]
    %v114 = vld [vmem:[#allocation2 + $0x70] sm:$0xff]
    %v115 = vld [vmem:[#allocation2 + $0x78] sm:$0xff]
    %v116 = vld [vmem:[#allocation2 + $0x80] sm:$0xff]
    %v117 = vld [vmem:[#allocation2 + $0x88] sm:$0xff]
    %v118 = vld [vmem:[#allocation2 + $0x90] sm:$0xff]
    %v119 = vld [vmem:[#allocation2 + $0x98] sm:$0xff]
    %v120 = vld [vmem:[#allocation2 + $0xa0] sm:$0xff]
    %v121 = vld [vmem:[#allocation2 + $0xa8] sm:$0xff]
    %v122 = vld [vmem:[#allocation2 + $0xb0] sm:$0xff]
    %v123 = vld [vmem:[#allocation2 + $0xb8] sm:$0xff]
    %v124 = vld [vmem:[#allocation2 + $0xc0] sm:$0xff]
    %v125 = vld [vmem:[#allocation2 + $0xc8] sm:$0xff]
    %v126 = vld [vmem:[#allocation2 + $0xd0] sm:$0xff]
    %v127 = vld [vmem:[#allocation2 + $0xd8] sm:$0xff]
    %v128 = vld [vmem:[#allocation2 + $0xe0] sm:$0xff]
    %v129 = vld [vmem:[#allocation2 + $0xe8] sm:$0xff]
    %v130 = vld [vmem:[#allocation2 + $0xf0] sm:$0xff]
    %v131 = vld [vmem:[#allocation2 + $0xf8] sm:$0xff]
    %v132 = vld [vmem:[#allocation2 + $0x100] sm:$0xff]
    %v133 = vld [vmem:[#allocation2 + $0x108] sm:$0xff]
    %v134 = vld [vmem:[#allocation2 + $0x110] sm:$0xff]
    %v135 = vld [vmem:[#allocation2 + $0x118] sm:$0xff]
    %v136 = vld [vmem:[#allocation2 + $0x120] sm:$0xff]
    %v137 = vld [vmem:[#allocation2 + $0x128] sm:$0xff]
    %v138 = vld [vmem:[#allocation2 + $0x130] sm:$0xff]
    %v139 = vld [vmem:[#allocation2 + $0x138] sm:$0xff]
    %v140 = vld [vmem:[#allocation2 + $0x140] sm:$0xff]
    %v141 = vld [vmem:[#allocation2 + $0x148] sm:$0xff]
    %v142 = vld [vmem:[#allocation2 + $0x150] sm:$0xff]
    %v143 = vld [vmem:[#allocation2 + $0x158] sm:$0xff]
    %v144 = vld [vmem:[#allocation2 + $0x160] sm:$0xff]
    %v145 = vld [vmem:[#allocation2 + $0x168] sm:$0xff]
    %v146 = vld [vmem:[#allocation2 + $0x170] sm:$0xff]
    %v147 = vld [vmem:[#allocation2 + $0x178] sm:$0xff]
    %v148 = vld [vmem:[#allocation2 + $0x180] sm:$0xff]
    %v149 = vld [vmem:[#allocation2 + $0x188] sm:$0xff]
    %v150 = vld [vmem:[#allocation2 + $0x190] sm:$0xff]
    %v151 = vld [vmem:[#allocation2 + $0x198] sm:$0xff]
    %vm152 = vcmask 261120
    %v154 = vsel %vm152, %v99, 0
    %156 = vmatprep.subr.mxu0 0.0
    %157 = vmatpush1.msra.mxu0 %v115
    %158 = vmatprep.subr.mxu0 0.0
    %159 = vmatpush1.msra.mxu0 %v114
    %160 = vmatprep.subr.mxu0 0.0
    %161 = vmatpush1.msra.mxu0 %v113
    %162 = vmatprep.subr.mxu0 0.0
    %163 = vmatpush1.msra.mxu0 %v112
    %164 = vmatprep.subr.mxu0 0.0
    %165 = vmatpush1.msra.mxu0 %v111
    %166 = vmatprep.subr.mxu0 0.0
    %167 = vmatpush1.msra.mxu0 %v110
    %168 = vmatprep.subr.mxu0 0.0
    %169 = vmatpush1.msra.mxu0 %v109
    %170 = vmatprep.subr.mxu0 0.0
    %171 = vmatpush1.msra.mxu0 %v108
    %172 = vmatprep.subr.mxu0 0.0
    %173 = vmatpush1.msra.mxu0 %v107
    %174 = vmatprep.subr.mxu0 0.0
    %175 = vmatpush1.msra.mxu0 %v106
    %176 = vmatprep.subr.mxu0 0.0
    %177 = vmatpush1.msra.mxu0 %v105
    %178 = vmatprep.subr.mxu0 0.0
    %179 = vmatpush1.msra.mxu0 %v104
    %180 = vmatprep.subr.mxu0 0.0
    %181 = vmatpush1.msra.mxu0 %v103
    %182 = vmatprep.subr.mxu0 0.0
    %183 = vmatpush1.msra.mxu0 %v102
    %184 = vmatprep.subr.mxu0 0.0
    %185 = vmatpush1.msra.mxu0 %v101
    %186 = vmatprep.subr.mxu0 0.0
    %187 = vmatpush1.msra.mxu0 %v100
    %188 = vmatprep.subr.mxu0 0.0
    %189 = vmatpush2.msra.mxu0 %v131
    %190 = vmatprep.subr.mxu0 0.0
    %191 = vmatpush2.msra.mxu0 %v130
    %192 = vmatprep.subr.mxu0 0.0
    %193 = vmatpush2.msra.mxu0 %v129
    %194 = vmatprep.subr.mxu0 0.0
    %195 = vmatpush2.msra.mxu0 %v128
    %196 = vmatprep.subr.mxu0 0.0
    %197 = vmatpush2.msra.mxu0 %v127
    %198 = vmatprep.subr.mxu0 0.0
    %199 = vmatpush2.msra.mxu0 %v126
    %200 = vmatprep.subr.mxu0 0.0
    %201 = vmatpush2.msra.mxu0 %v125
    %202 = vmatprep.subr.mxu0 0.0
    %203 = vmatpush2.msra.mxu0 %v124
    %204 = vmatprep.subr.mxu0 0.0
    %205 = vmatpush2.msra.mxu0 %v123
    %206 = vmatprep.subr.mxu0 0.0
    %207 = vmatpush2.msra.mxu0 %v122
    %208 = vmatprep.subr.mxu0 0.0
    %209 = vmatpush2.msra.mxu0 %v121
    %210 = vmatprep.subr.mxu0 0.0
    %211 = vmatpush2.msra.mxu0 %v120
    %212 = vmatprep.subr.mxu0 0.0
    %213 = vmatpush2.msra.mxu0 %v119
    %214 = vmatprep.subr.mxu0 0.0
    %215 = vmatpush2.msra.mxu0 %v118
    %216 = vmatprep.subr.mxu0 0.0
    %217 = vmatpush2.msra.mxu0 %v117
    %218 = vmatprep.subr.mxu0 0.0
    %219 = vmatpush2.msra.mxu0 %v116
    %220 = vmatprep.mubr.f32.mxu0 %v97
    %221 = vmatmul.mubr.f32.gmra.mxu0 %v96
    %v222 = vpop.f32.mrf.mxu0
    %v223 = vadd.f32 0.0, %v222
    %v224 = vpop.f32.mrf.mxu0
    %225 = vdwg.mxu0
    %226 = vmatprep.subr.mxu0 0.0
    %227 = vmatpush1.msra.mxu0 %v147
    %228 = vmatprep.subr.mxu0 0.0
    %229 = vmatpush1.msra.mxu0 %v146
    %230 = vmatprep.subr.mxu0 0.0
    %231 = vmatpush1.msra.mxu0 %v145
    %232 = vmatprep.subr.mxu0 0.0
    %233 = vmatpush1.msra.mxu0 %v144
    %234 = vmatprep.subr.mxu0 0.0
    %235 = vmatpush1.msra.mxu0 %v143
    %236 = vmatprep.subr.mxu0 0.0
    %237 = vmatpush1.msra.mxu0 %v142
    %238 = vmatprep.subr.mxu0 0.0
    %239 = vmatpush1.msra.mxu0 %v141
    %240 = vmatprep.subr.mxu0 0.0
    %241 = vmatpush1.msra.mxu0 %v140
    %242 = vmatprep.subr.mxu0 0.0
    %243 = vmatpush1.msra.mxu0 %v139
    %244 = vmatprep.subr.mxu0 0.0
    %245 = vmatpush1.msra.mxu0 %v138
    %246 = vmatprep.subr.mxu0 0.0
    %247 = vmatpush1.msra.mxu0 %v137
    %248 = vmatprep.subr.mxu0 0.0
    %249 = vmatpush1.msra.mxu0 %v136
    %250 = vmatprep.subr.mxu0 0.0
    %251 = vmatpush1.msra.mxu0 %v135
    %252 = vmatprep.subr.mxu0 0.0
    %253 = vmatpush1.msra.mxu0 %v134
    %254 = vmatprep.subr.mxu0 0.0
    %255 = vmatpush1.msra.mxu0 %v133
    %256 = vmatprep.subr.mxu0 0.0
    %257 = vmatpush1.msra.mxu0 %v132
    %258 = vmatprep.subr.mxu0 0.0
    %259 = vmatpush2.msra.mxu0 0.0
    %260 = vmatprep.subr.mxu0 0.0
    %261 = vmatpush2.msra.mxu0 0.0
    %262 = vmatprep.subr.mxu0 0.0
    %263 = vmatpush2.msra.mxu0 0.0
    %264 = vmatprep.subr.mxu0 0.0
    %265 = vmatpush2.msra.mxu0 0.0
    %266 = vmatprep.subr.mxu0 0.0
    %267 = vmatpush2.msra.mxu0 0.0
    %268 = vmatprep.subr.mxu0 0.0
    %269 = vmatpush2.msra.mxu0 0.0
    %270 = vmatprep.subr.mxu0 0.0
    %271 = vmatpush2.msra.mxu0 0.0
    %272 = vmatprep.subr.mxu0 0.0
    %273 = vmatpush2.msra.mxu0 0.0
    %274 = vmatprep.subr.mxu0 0.0
    %275 = vmatpush2.msra.mxu0 0.0
    %276 = vmatprep.subr.mxu0 0.0
    %277 = vmatpush2.msra.mxu0 0.0
    %278 = vmatprep.subr.mxu0 0.0
    %279 = vmatpush2.msra.mxu0 0.0
    %280 = vmatprep.subr.mxu0 0.0
    %281 = vmatpush2.msra.mxu0 0.0
    %282 = vmatprep.subr.mxu0 0.0
    %283 = vmatpush2.msra.mxu0 %v151
    %284 = vmatprep.subr.mxu0 0.0
    %285 = vmatpush2.msra.mxu0 %v150
    %286 = vmatprep.subr.mxu0 0.0
    %287 = vmatpush2.msra.mxu0 %v149
    %288 = vmatprep.subr.mxu0 0.0
    %289 = vmatpush2.msra.mxu0 %v148
    %290 = vmatprep.mubr.f32.mxu0 %v154
    %291 = vmatmul.mubr.f32.gmra.mxu0 %v98
    %v292 = vpop.f32.mrf.mxu0
    %v293 = vadd.f32 %v223, %v292
    %v294 = vpop.f32.mrf.mxu0
    %295 = vdwg.mxu0
    %v296 = vxor.u32 %v293, 2147483648
    %v297 = vmul.f32 %v296, 1.442695
    %v298 = vpow.pop %v297
    %v299 = vadd.f32 %v298, 1.0
    %v300 = vrcp.pop %v299
    %v301 = vmul.f32 1.0, %v300
    %v302 = vmul.f32 %v293, %v301
    %v303 = vld [vmem:[#allocation5] sm:$0xff]
    %v304 = vld [vmem:[#allocation5 + $0x8] sm:$0xff]
    %v305 = vld [vmem:[#allocation5 + $0x10] sm:$0xff]
    %v306 = vld [vmem:[#allocation5 + $0x18] sm:$0xff]
    %v307 = vld [vmem:[#allocation5 + $0x20] sm:$0xff]
    %v308 = vld [vmem:[#allocation5 + $0x28] sm:$0xff]
    %v309 = vld [vmem:[#allocation5 + $0x30] sm:$0xff]
    %v310 = vld [vmem:[#allocation5 + $0x38] sm:$0xff]
    %v311 = vld [vmem:[#allocation5 + $0x40] sm:$0xff]
    %v312 = vld [vmem:[#allocation5 + $0x48] sm:$0xff]
    %v313 = vld [vmem:[#allocation5 + $0x50] sm:$0xff]
    %v314 = vld [vmem:[#allocation5 + $0x58] sm:$0xff]
    %v315 = vld [vmem:[#allocation5 + $0x60] sm:$0xff]
    %v316 = vld [vmem:[#allocation5 + $0x68] sm:$0xff]
    %v317 = vld [vmem:[#allocation5 + $0x70] sm:$0xff]
    %v318 = vld [vmem:[#allocation5 + $0x78] sm:$0xff]
    %v319 = vld [vmem:[%s3] sm:$0x1]
    %v321 = vlaneseq
    %v322 = vshrl.u32 %v321, 7
    %v323 = vsub.s32 0, %v322
    %v324 = vrot.slane %v319, %v323
    %326 = vmatprep.subr.mxu0 0.0
    %327 = vmatpush1.msra.mxu0 %v318
    %328 = vmatprep.subr.mxu0 0.0
    %329 = vmatpush1.msra.mxu0 %v317
    %330 = vmatprep.subr.mxu0 0.0
    %331 = vmatpush1.msra.mxu0 %v316
    %332 = vmatprep.subr.mxu0 0.0
    %333 = vmatpush1.msra.mxu0 %v315
    %334 = vmatprep.subr.mxu0 0.0
    %335 = vmatpush1.msra.mxu0 %v314
    %336 = vmatprep.subr.mxu0 0.0
    %337 = vmatpush1.msra.mxu0 %v313
    %338 = vmatprep.subr.mxu0 0.0
    %339 = vmatpush1.msra.mxu0 %v312
    %340 = vmatprep.subr.mxu0 0.0
    %341 = vmatpush1.msra.mxu0 %v311
    %342 = vmatprep.subr.mxu0 0.0
    %343 = vmatpush1.msra.mxu0 %v310
    %344 = vmatprep.subr.mxu0 0.0
    %345 = vmatpush1.msra.mxu0 %v309
    %346 = vmatprep.subr.mxu0 0.0
    %347 = vmatpush1.msra.mxu0 %v308
    %348 = vmatprep.subr.mxu0 0.0
    %349 = vmatpush1.msra.mxu0 %v307
    %350 = vmatprep.subr.mxu0 0.0
    %351 = vmatpush1.msra.mxu0 %v306
    %352 = vmatprep.subr.mxu0 0.0
    %353 = vmatpush1.msra.mxu0 %v305
    %354 = vmatprep.subr.mxu0 0.0
    %355 = vmatpush1.msra.mxu0 %v304
    %356 = vmatprep.subr.mxu0 0.0
    %357 = vmatpush1.msra.mxu0 %v303
    %358 = vmatprep.subr.mxu0 0.0
    %359 = vmatpush2.msra.mxu0 0.0
    %360 = vmatprep.subr.mxu0 0.0
    %361 = vmatpush2.msra.mxu0 0.0
    %362 = vmatprep.subr.mxu0 0.0
    %363 = vmatpush2.msra.mxu0 0.0
    %364 = vmatprep.subr.mxu0 0.0
    %365 = vmatpush2.msra.mxu0 0.0
    %366 = vmatprep.subr.mxu0 0.0
    %367 = vmatpush2.msra.mxu0 0.0
    %368 = vmatprep.subr.mxu0 0.0
    %369 = vmatpush2.msra.mxu0 0.0
    %370 = vmatprep.subr.mxu0 0.0
    %371 = vmatpush2.msra.mxu0 0.0
    %372 = vmatprep.subr.mxu0 0.0
    %373 = vmatpush2.msra.mxu0 0.0
    %374 = vmatprep.subr.mxu0 0.0
    %375 = vmatpush2.msra.mxu0 0.0
    %376 = vmatprep.subr.mxu0 0.0
    %377 = vmatpush2.msra.mxu0 0.0
    %378 = vmatprep.subr.mxu0 0.0
    %379 = vmatpush2.msra.mxu0 0.0
    %380 = vmatprep.subr.mxu0 0.0
    %381 = vmatpush2.msra.mxu0 0.0
    %382 = vmatprep.subr.mxu0 0.0
    %383 = vmatpush2.msra.mxu0 0.0
    %384 = vmatprep.subr.mxu0 0.0
    %385 = vmatpush2.msra.mxu0 0.0
    %386 = vmatprep.subr.mxu0 0.0
    %387 = vmatpush2.msra.mxu0 0.0
    %388 = vmatprep.subr.mxu0 0.0
    %389 = vmatpush2.msra.mxu0 0.0
    %390 = vmatprep.mubr.f32.mxu0 0.0
    %391 = vmatmul.mubr.f32.gmra.mxu0 %v302
    %v392 = vpop.f32.mrf.mxu0
    %v393 = vadd.f32 %v324, %v392
    %v394 = vpop.f32.mrf.mxu0
    %395 = vdwg.mxu0
    %396 = vst [vmem:[#allocation7] sm:$0xff] %v393
    // Predicated region
    $region26: #{tpu_custom_call.1} parent=1 // pred_check
      _
    $region27: #{tpu_custom_call.1} parent=1 // pred_check_branch
      %398 = sbr.rel (0) target = $region29
    $region28: #{tpu_custom_call.1} parent=1 // pred_region
      %s400 = ssub.s32 128, 128
      %401 = vsyncadd [#allocation4], %s400
      %s403 = sshll.u32 [#allocation7], 4
      %s404 = int_to_ptr.vmem [resolvable:$true] %s403
      %406 = dma.vmem_to_hbm [thread:$0]  %s404, 128, %s4, [#allocation4]
    $region29: #{tpu_custom_call.1} parent=1 // pred_fallthru
      _
    // Predicated region
    $region30: #{tpu_custom_call.1} parent=1 // pred_check
      _
    $region31: #{tpu_custom_call.1} parent=1 // pred_check_branch
      %408 = sbr.rel (0) target = $region33
    $region32: #{tpu_custom_call.1} parent=1 // pred_region
      %409 = dma.done [#allocation4], 128
    $region33: #{tpu_custom_call.1} parent=1 // pred_fallthru
      _
    %410 = vsyncpa [#allocation3], 1
    %411 = vsyncpa [#allocation6], 1
    %412 = vsyncpa [#allocation4], 1

</llo_original>
